<compile_context>
chip_gen: v7x
topology: tpu7x:2x2x1
jax: 0.10.0
libtpu: 0.0.40
codegen_flags: <defaults>
</compile_context>

<pallas_src>
import math
import functools

import numpy as np
import jax
import jax.numpy as jnp
from jax import lax
from jax.experimental import pallas as pl
from jax.experimental.pallas import tpu as pltpu


# ---------------------------------------------------------------------------
# Host-side: build the separable resample operator (lanczos AA + bicubic)
# exactly as sinc/lanczos/ramp/resample do in the PyTorch reference.
# ---------------------------------------------------------------------------
def _sinc(x):
    return np.where(x != 0, np.sin(np.pi * x) / (np.pi * x), 1.0)


def _lanczos(x, a):
    cond = np.logical_and(-a < x, x < a)
    out = np.where(cond, _sinc(x) * _sinc(x / a), 0.0)
    return out / out.sum()


def _ramp(ratio, width):
    n = math.ceil(width / ratio + 1)
    out = np.empty(n, dtype=np.float64)
    cur = 0.0
    for i in range(n):
        out[i] = cur
        cur += ratio
    return np.concatenate([-out[1:][::-1], out])[1:-1]


def _antialias_matrix(h, dh):
    """(h, h) matrix == reflect pad + 1D lanczos conv, applied when dh < h."""
    if dh >= h:
        return np.eye(h, dtype=np.float64)
    k = _lanczos(_ramp(dh / h, 2), 2)
    K = k.shape[0]
    pad = (K - 1) // 2
    assert pad <= h - 1, "reflect padding must be smaller than input size"
    A = np.zeros((h, h), dtype=np.float64)
    for i in range(h):
        for kk in range(K):
            p = i - pad + kk
            if p < 0:                 # PyTorch 'reflect' (no edge repeat)
                p = -p
            if p > h - 1:
                p = 2 * (h - 1) - p
            A[i, p] += k[kk]
    return A


def _bicubic_matrix(h, dh, A=-0.75):
    """(dh, h) matrix == PyTorch bicubic interp along one axis, align_corners=True."""
    def c1(x):
        return ((A + 2) * x - (A + 3)) * x * x + 1

    def c2(x):
        return ((A * x - 5 * A) * x + 8 * A) * x - 4 * A

    Bm = np.zeros((dh, h), dtype=np.float64)
    for i in range(dh):
        src = i * (h - 1) / (dh - 1) if dh > 1 else 0.0
        x0 = math.floor(src)
        t = src - x0
        w = (c2(t + 1.0), c1(t), c1(1.0 - t), c2(2.0 - t))
        for m in range(4):
            idx = min(max(x0 - 1 + m, 0), h - 1)
            Bm[i, idx] += w[m]
    return Bm


def _resample_matrix(size, cut_size):
    """Combined (cut_size, size) operator: bicubic @ lanczos-anti-alias."""
    return (_bicubic_matrix(size, cut_size) @ _antialias_matrix(size, cut_size)).astype(np.float32)


def _build_cutout_operators(H, W, cut_size, cutn, cut_pow, seed):
    """Fold each random crop (size, offset) into zero-padded full-size operators.

    Returns mh: (cutn, cut, H), mw: (cutn, cut, W), and the (size, ox, oy) params.
    TODO(synk): torch.rand/randint drive shape-determining sizes, so the RNG must
    run on the host; numpy RNG is distributionally equivalent, not bit-identical.
    """
    sideY, sideX = H, W
    max_size = min(sideX, sideY)
    min_size = min(sideX, sideY, cut_size)
    rng = np.random.default_rng(seed)
    mh = np.zeros((cutn, cut_size, H), dtype=np.float32)
    mw = np.zeros((cutn, cut_size, W), dtype=np.float32)
    params = []
    for i in range(cutn):
        r = float(rng.random())
        size = int(r ** cut_pow * (max_size - min_size) + min_size)
        offsetx = int(rng.integers(0, sideX - size + 1))
        offsety = int(rng.integers(0, sideY - size + 1))
        M = _resample_matrix(size, cut_size)              # (cut, size)
        mh[i, :, offsety:offsety + size] = M
        mw[i, :, offsetx:offsetx + size] = M
        params.append((size, offsetx, offsety))
    return mh, mw, params


# ---------------------------------------------------------------------------
# Tiling heuristics
# ---------------------------------------------------------------------------
def _choose_cutout_group(cutn, cut, mxu_rows=256):
    """Cutouts stacked per grid step: fill the MXU M dim (>=256 on v6e/v7x when
    possible) while keeping >= 2 parallel grid steps so both v7x TCs get work."""
    allowed = [d for d in range(1, cutn + 1)
               if cutn % d == 0 and (cutn < 2 or cutn // d >= 2)]
    if not allowed:
        return 1
    for d in sorted(allowed):
        if d * cut >= mxu_rows:
            return d
    return max(allowed)


def _padded_vmem_bytes(shape, itemsize):
    """(8, 128)-padded VMEM footprint of one buffer."""
    shape = tuple(int(s) for s in shape)
    lead = 1
    for s in shape[:-2]:
        lead *= s
    sub = -(-shape[-2] // 8) * 8
    lane = -(-shape[-1] // 128) * 128
    return lead * sub * lane * itemsize


def _choose_plane_chunk(B, H, W, cut, cpg, in_itemsize, out_itemsize, budget_bytes):
    """Largest plane chunk TB (divisor of B) whose double-buffered working set
    fits the budget (sized for v7x's 64 MiB VMEM with headroom)."""
    def need(tb):
        n = 2 * _padded_vmem_bytes((tb, H, W), in_itemsize)              # image chunk
        n += 2 * _padded_vmem_bytes((cpg * cut, H), in_itemsize)         # M_h block
        n += 2 * _padded_vmem_bytes((cpg, W, cut), in_itemsize)          # M_w^T block
        n += 2 * _padded_vmem_bytes((cpg, tb, cut, cut), out_itemsize)   # output block
        n += _padded_vmem_bytes((cpg * cut, W), 4)                       # f32 intermediate
        return n

    for tb in sorted((d for d in range(1, B + 1) if B % d == 0), reverse=True):
        if need(tb) <= budget_bytes:
            return tb, need(tb)
    return 1, need(1)


# ---------------------------------------------------------------------------
# Pallas kernel
# ---------------------------------------------------------------------------
def _cutouts_kernel(x_ref, mh_ref, mwt_ref, o_ref, *, cpg, cut, tb):
    # x_ref  : (TB, H, W)           image planes of this chunk (compute dtype)
    # mh_ref : (CPG*cut, H)         stacked H-axis operators of this cutout group
    # mwt_ref: (CPG, W, cut)        transposed W-axis operators
    # o_ref  : (CPG, TB, cut, cut)  output block, already in the final layout
    prec = lax.Precision.HIGHEST if x_ref.dtype == jnp.float32 else None
    mh = mh_ref[...]
    mwt = mwt_ref[...]

    def plane(b, carry):
        # (CPG*cut, H) @ (H, W): one MXU matmul per plane with the M dimension
        # filled by CPG stacked cutouts; f32 accumulation.
        y = jnp.dot(mh, x_ref[b], preferred_element_type=jnp.float32,
                    precision=prec)                                   # (CPG*cut, W)
        y = y.astype(mwt.dtype)
        for c in range(cpg):                       # static unroll over the group
            o = jnp.dot(y[c * cut:(c + 1) * cut, :], mwt[c],
                        preferred_element_type=jnp.float32,
                        precision=prec)                               # (cut, cut)
            # clamp_with_grad forward == clamp(0, 1)
            o_ref[c, b] = jnp.clip(o, 0.0, 1.0).astype(o_ref.dtype)
        return carry

    lax.fori_loop(0, tb, plane, None)


def _cutouts_pallas(x_pl, mh_g, mwt_g, *, cut, cpg, tb, out_dtype, vmem_limit_bytes):
    B, H, W = x_pl.shape
    nG = mh_g.shape[0]
    cutn = nG * cpg
    nB = B // tb
    kernel = functools.partial(_cutouts_kernel, cpg=cpg, cut=cut, tb=tb)
    return pl.pallas_call(
        kernel,
        out_shape=jax.ShapeDtypeStruct((cutn, B, cut, cut), out_dtype),
        # plane chunks outer (image chunk re-DMA'd only when it changes),
        # cutout groups inner (tiny operator blocks cycle, double-buffered).
        grid=(nB, nG),
        in_specs=[
            pl.BlockSpec((tb, H, W), lambda j, g: (j, 0, 0)),
            pl.BlockSpec((None, cpg * cut, H), lambda j, g: (g, 0, 0)),
            pl.BlockSpec((None, cpg, W, cut), lambda j, g: (g, 0, 0, 0)),
        ],
        out_specs=pl.BlockSpec((cpg, tb, cut, cut), lambda j, g: (g, j, 0, 0)),
        compiler_params=pltpu.CompilerParams(
            dimension_semantics=("parallel", "parallel"),
            vmem_limit_bytes=vmem_limit_bytes,
        ),
    )(x_pl, mh_g, mwt_g)


# ---------------------------------------------------------------------------
# MakeCutoutsOrig.forward equivalent
# ---------------------------------------------------------------------------
def make_cutouts_orig(x, cut_size, cutn, cut_pow=1.0, seed=0,
                      compute_dtype=jnp.bfloat16):
    """x: (N, C, H, W) float -> (cutn * N, C, cut_size, cut_size), dtype of x.

    compute_dtype=jnp.bfloat16 (default) uses native-MXU-rate operands with f32
    accumulation; pass jnp.float32 for a tight-tolerance path.
    TODO(synk): only the forward of clamp_with_grad is implemented; a
    jax.custom_vjp would be needed to reproduce its straight-through backward.
    """
    N, C, H, W = x.shape
    B = N * C
    cut = cut_size

    # Host-side (numpy) RNG + operator construction: no device round-trips.
    mh, mw, _ = _build_cutout_operators(H, W, cut, cutn, cut_pow, seed)

    cpg = _choose_cutout_group(cutn, cut)                  # cutouts per grid step
    nG = cutn // cpg

    in_item = jnp.dtype(compute_dtype).itemsize
    out_item = jnp.dtype(x.dtype).itemsize
    tb, need = _choose_plane_chunk(B, H, W, cut, cpg, in_item, out_item,
                                   budget_bytes=40 * 2**20)
    vmem_limit = int(min(56 * 2**20, max(2 * need, 32 * 2**20)))

    # Host-side packing (pure reshapes of host arrays -> free):
    #   mh_g[g]  = rows of M_h for cutouts g*CPG .. g*CPG+CPG-1 stacked,
    #   mwt_g[g, c] = M_w[g*CPG+c]^T.
    mh_g = mh.reshape(nG, cpg * cut, H)
    mwt_g = np.transpose(mw, (0, 2, 1)).reshape(nG, cpg, W, cut)

    # (N, C, H, W) -> (B, H, W) is a free reshape; bf16 cast halves HBM traffic.
    x_pl = x.reshape(B, H, W).astype(compute_dtype)

    out = _cutouts_pallas(
        x_pl,
        jnp.asarray(mh_g, dtype=compute_dtype),
        jnp.asarray(mwt_g, dtype=compute_dtype),
        cut=cut, cpg=cpg, tb=tb, out_dtype=x.dtype,
        vmem_limit_bytes=vmem_limit)                       # (cutn, B, cut, cut)

    # torch.cat(cutouts, dim=0) layout: (cutn, N, C, cut, cut) -> (cutn*N, C, ...).
    # Pure reshape (B = N*C is contiguous) -> no post-kernel transpose.
    return out.reshape(cutn * N, C, cut, cut)


# ---------------------------------------------------------------------------
if __name__ == "__main__":
    # Module config (MakeCutoutsOrig has no learnable parameters)
    cut_size, cutn, cut_pow, seed = 8, 4, 1.0, 0

    key = jax.random.PRNGKey(0)
    x = jax.random.uniform(key, (2, 4, 16, 16), dtype=jnp.float32)   # NCHW
    N, C, H, W = x.shape
    B = N * C

    # Default path: bf16 operands, f32 accumulation.
    out = make_cutouts_orig(x, cut_size, cutn, cut_pow, seed=seed)
    out = jax.block_until_ready(out)
    assert out.shape == (cutn * N, C, cut_size, cut_size), out.shape

    # --- Reference (host, float64): folded-operator einsum ---------------------
    mh, mw, params = _build_cutout_operators(H, W, cut_size, cutn, cut_pow, seed)
    x64 = np.asarray(x, dtype=np.float64).reshape(B, H, W)
    ref = np.clip(np.einsum('ich,bhw,ikw->ibck',
                            mh.astype(np.float64), x64, mw.astype(np.float64)),
                  0.0, 1.0)
    ref = ref.reshape(cutn * N, C, cut_size, cut_size)

    # bf16-operand path (default): loose tolerance.
    np.testing.assert_allclose(np.asarray(out), ref, rtol=0.0, atol=5e-2)

    # f32-operand path: tight tolerance.
    out_f32 = jax.block_until_ready(
        make_cutouts_orig(x, cut_size, cutn, cut_pow, seed=seed,
                          compute_dtype=jnp.float32))
    np.testing.assert_allclose(np.asarray(out_f32), ref, rtol=0.0, atol=5e-3)

    # --- Host float64 check: folding the crop into zero-padded operators is
    #     exactly the original crop -> resample math (cutout 0) -----------------
    size0, ox0, oy0 = params[0]
    M0 = _resample_matrix(size0, cut_size).astype(np.float64)
    crop = x64[:, oy0:oy0 + size0, ox0:ox0 + size0]
    direct = np.einsum('ij,bjk,lk->bil', M0, crop, M0)
    folded = np.einsum('ch,bhw,kw->bck',
                       mh[0].astype(np.float64), x64, mw[0].astype(np.float64))
    np.testing.assert_allclose(folded, direct, rtol=1e-10, atol=1e-10)

    print("KERNEL_OK")
</pallas_src>

<mosaic_0001>
module attributes {stable_mosaic.version = 11 : i64} {
  func.func @_cutouts_kernel(%arg0: i32, %arg1: i32, %arg2: memref<8x16x16xbf16, #tpu.memory_space<vmem>>, %arg3: memref<1x16x16xbf16, #tpu.memory_space<vmem>>, %arg4: memref<1x2x16x8xbf16, #tpu.memory_space<vmem>>, %arg5: memref<2x8x8x8xf32, #tpu.memory_space<vmem>>) attributes {dimension_semantics = [#tpu.dimension_semantics<parallel>, #tpu.dimension_semantics<parallel>], iteration_bounds = array<i64: 1, 2>, scalar_prefetch = 0 : i64, scratch_operands = 0 : i64, tpu.core_type = #tpu.core_type<tc>, window_params = [{transform_indices = @transform_0, window_bounds = array<i64: 8, 16, 16>}, {transform_indices = @transform_1, window_bounds = array<i64: 1, 16, 16>}, {transform_indices = @transform_2, window_bounds = array<i64: 1, 2, 16, 8>}, {transform_indices = @transform_3, window_bounds = array<i64: 2, 8, 8, 8>}]} {
    %c0 = arith.constant 0 : index
    %c0_0 = arith.constant 0 : index
    %c0_1 = arith.constant 0 : index
    %0 = vector.load %arg3[%c0, %c0_0, %c0_1] : memref<1x16x16xbf16, #tpu.memory_space<vmem>>, vector<1x16x16xbf16>
    %1 = vector.shape_cast %0 : vector<1x16x16xbf16> to vector<16x16xbf16>
    %c0_2 = arith.constant 0 : index
    %c0_3 = arith.constant 0 : index
    %c0_4 = arith.constant 0 : index
    %c0_5 = arith.constant 0 : index
    %2 = vector.load %arg4[%c0_2, %c0_3, %c0_4, %c0_5] : memref<1x2x16x8xbf16, #tpu.memory_space<vmem>>, vector<1x2x16x8xbf16>
    %3 = vector.shape_cast %2 : vector<1x2x16x8xbf16> to vector<2x16x8xbf16>
    %c0_i32 = arith.constant 0 : i32
    %c8_i32 = arith.constant 8 : i32
    %4 = arith.addi %c0_i32, %c8_i32 : i32
    %c1_i32 = arith.constant 1 : i32
    scf.for %arg6 = %c0_i32 to %4 step %c1_i32  : i32 {
      %5 = arith.index_cast %arg6 : i32 to index
      %c0_7 = arith.constant 0 : index
      %c0_8 = arith.constant 0 : index
      %6 = vector.load %arg2[%5, %c0_7, %c0_8] : memref<8x16x16xbf16, #tpu.memory_space<vmem>>, vector<1x16x16xbf16>
      %7 = vector.shape_cast %6 : vector<1x16x16xbf16> to vector<16x16xbf16>
      %cst = arith.constant dense<0.000000e+00> : vector<16x16xf32>
      %8 = tpu.matmul %1, %7, %cst {dimension_numbers = #tpu.dot_dimension_numbers<[1], [0], [0], [1], [0, 0, 1, 1], [], []>} : vector<16x16xbf16>, vector<16x16xbf16>, vector<16x16xf32> -> vector<16x16xf32>
      %9 = arith.truncf %8 : vector<16x16xf32> to vector<16x16xbf16>
      %10 = vector.extract_strided_slice %9 {offsets = [0, 0], sizes = [8, 16], strides = [1, 1]} : vector<16x16xbf16> to vector<8x16xbf16>
      %11 = vector.extract_strided_slice %3 {offsets = [0, 0, 0], sizes = [1, 16, 8], strides = [1, 1, 1]} : vector<2x16x8xbf16> to vector<1x16x8xbf16>
      %12 = vector.shape_cast %11 : vector<1x16x8xbf16> to vector<16x8xbf16>
      %cst_9 = arith.constant dense<0.000000e+00> : vector<8x8xf32>
      %13 = tpu.matmul %10, %12, %cst_9 {dimension_numbers = #tpu.dot_dimension_numbers<[1], [0], [0], [1], [0, 0, 1, 1], [], []>} : vector<8x16xbf16>, vector<16x8xbf16>, vector<8x8xf32> -> vector<8x8xf32>
      %cst_10 = arith.constant 0.000000e+00 : f32
      %cst_11 = arith.constant 1.000000e+00 : f32
      %14 = vector.broadcast %cst_10 : f32 to vector<8x8xf32>
      %15 = arith.maximumf %14, %13 : vector<8x8xf32>
      %16 = vector.broadcast %cst_11 : f32 to vector<8x8xf32>
      %17 = arith.minimumf %16, %15 : vector<8x8xf32>
      %c0_12 = arith.constant 0 : index
      %18 = arith.index_cast %arg6 : i32 to index
      %c0_13 = arith.constant 0 : index
      %c0_14 = arith.constant 0 : index
      %19 = vector.load %arg5[%c0_12, %18, %c0_13, %c0_14] : memref<2x8x8x8xf32, #tpu.memory_space<vmem>>, vector<1x1x8x8xf32>
      %20 = vector.shape_cast %19 : vector<1x1x8x8xf32> to vector<8x8xf32>
      %21 = vector.shape_cast %17 : vector<8x8xf32> to vector<1x1x8x8xf32>
      tpu.vector_store %arg5[%c0_12, %18, %c0_13, %c0_14], %21 {strides = array<i32>} : memref<2x8x8x8xf32, #tpu.memory_space<vmem>>, vector<1x1x8x8xf32>,
      %22 = vector.extract_strided_slice %9 {offsets = [8, 0], sizes = [8, 16], strides = [1, 1]} : vector<16x16xbf16> to vector<8x16xbf16>
      %23 = vector.extract_strided_slice %3 {offsets = [1, 0, 0], sizes = [1, 16, 8], strides = [1, 1, 1]} : vector<2x16x8xbf16> to vector<1x16x8xbf16>
      %24 = vector.shape_cast %23 : vector<1x16x8xbf16> to vector<16x8xbf16>
      %cst_15 = arith.constant dense<0.000000e+00> : vector<8x8xf32>
      %25 = tpu.matmul %22, %24, %cst_15 {dimension_numbers = #tpu.dot_dimension_numbers<[1], [0], [0], [1], [0, 0, 1, 1], [], []>} : vector<8x16xbf16>, vector<16x8xbf16>, vector<8x8xf32> -> vector<8x8xf32>
      %cst_16 = arith.constant 0.000000e+00 : f32
      %cst_17 = arith.constant 1.000000e+00 : f32
      %26 = vector.broadcast %cst_16 : f32 to vector<8x8xf32>
      %27 = arith.maximumf %26, %25 : vector<8x8xf32>
      %28 = vector.broadcast %cst_17 : f32 to vector<8x8xf32>
      %29 = arith.minimumf %28, %27 : vector<8x8xf32>
      %c1 = arith.constant 1 : index
      %30 = arith.index_cast %arg6 : i32 to index
      %c0_18 = arith.constant 0 : index
      %c0_19 = arith.constant 0 : index
      %31 = vector.load %arg5[%c1, %30, %c0_18, %c0_19] : memref<2x8x8x8xf32, #tpu.memory_space<vmem>>, vector<1x1x8x8xf32>
      %32 = vector.shape_cast %31 : vector<1x1x8x8xf32> to vector<8x8xf32>
      %33 = vector.shape_cast %29 : vector<8x8xf32> to vector<1x1x8x8xf32>
      tpu.vector_store %arg5[%c1, %30, %c0_18, %c0_19], %33 {strides = array<i32>} : memref<2x8x8x8xf32, #tpu.memory_space<vmem>>, vector<1x1x8x8xf32>,
    }
    %c8_i32_6 = arith.constant 8 : i32
    return
  }
  func.func @transform_0(%arg0: i32, %arg1: i32) -> (i32, i32, i32) {
    %c0_i32 = arith.constant 0 : i32
    %c0_i32_0 = arith.constant 0 : i32
    %c0_i32_1 = arith.constant 0 : i32
    return %arg0, %c0_i32, %c0_i32_0 : i32, i32, i32
  }
  func.func @transform_1(%arg0: i32, %arg1: i32) -> (i32, i32, i32) {
    %c0_i32 = arith.constant 0 : i32
    %c0_i32_0 = arith.constant 0 : i32
    %c0_i32_1 = arith.constant 0 : i32
    return %arg1, %c0_i32, %c0_i32_0 : i32, i32, i32
  }
  func.func @transform_2(%arg0: i32, %arg1: i32) -> (i32, i32, i32, i32) {
    %c0_i32 = arith.constant 0 : i32
    %c0_i32_0 = arith.constant 0 : i32
    %c0_i32_1 = arith.constant 0 : i32
    %c0_i32_2 = arith.constant 0 : i32
    return %arg1, %c0_i32, %c0_i32_0, %c0_i32_1 : i32, i32, i32, i32
  }
  func.func @transform_3(%arg0: i32, %arg1: i32) -> (i32, i32, i32, i32) {
    %c0_i32 = arith.constant 0 : i32
    %c0_i32_0 = arith.constant 0 : i32
    %c0_i32_1 = arith.constant 0 : i32
    return %arg1, %arg0, %c0_i32, %c0_i32_0 : i32, i32, i32, i32
  }
}

</mosaic_0001>

<llo_original>
// kernel: tpu_custom_call.1
$region0: #{tpu_custom_call.1}
  #allocation0 [shape = 'u32[]', space=smem, size = 0x4, offset = 0x4, fixed_abs, tag = 'smem constant byte address 0x4 - core index']
  #allocation1 [shape = 'u32[144,128]{1,0:T(1,128)}', space=vmem, size = 0x12000, scoped, tag = 'internal scratch']
  %s0 = inlined_call_operand.hbm [shape: bf16[8,16,16], index: 0, kind: input, shape index: {}]
  %s1 = inlined_call_operand.vmem [shape: bf16[2,16,16], index: 1, kind: input, shape index: {}]
  %s2 = inlined_call_operand.vmem [shape: bf16[2,2,16,8], index: 2, kind: input, shape index: {}]
  %s3 = inlined_call_operand.hbm [shape: f32[4,8,8,8], index: 3, kind: output, shape index: {}]
  %s4 = sld [smem:[#allocation0]]
  $region56: #{tpu_custom_call.1} parent=0
    _
  %s6 = ssub.s32 1, %s4
  %s7 = scalar_select 0, %s6, %s4
  $region1: #{tpu_custom_call.1} parent=0
    #allocation2 [shape = 'u8[32768]{0}', space=vmem, size = 0x8000, scoped, tag = 'input window, operand 0, single buffered']
    #allocation3 [shape = 's32[2]{0}', space=sflag, size = 0x8, scoped, tag = 'scoped memory for tpu_custom_call.1']
    #allocation4 [shape = 's32[2]{0}', space=sflag, size = 0x8, scoped, tag = 'scoped memory for tpu_custom_call.1']
    #allocation5 [shape = 'u8[131072]{0}', space=vmem, size = 0x20000, scoped, tag = 'output window, operand 0']
    %8 = vsyncpa [#allocation3], 0
    %9 = vsyncpa [#allocation4], 0
    %s10 = scalar_lea.sflag [#allocation4], 1
    %11 = vsyncpa %s10, 0
    loop: start=0, step=1, limit=4
    $region2: #{tpu_custom_call.1} parent=1 // loop_pre_header
      _
    $region3: #{tpu_custom_call.1} parent=1 // loop_header
      %s13 = sphi 0, %s17
      %p14 = scmp.ge.s32.totalorder %s13, 4
      %s20 = sphi 0, %s32
      %s21 = sphi 0, %s28
      %s22 = sphi 0, %s20
      %s23 = sphi 0, %s21
      %s24 = sphi 0, %s22
      %s25 = sphi 0, %s23
      %s35 = sphi 0, %s37
      %s38 = sphi 0, %s35
      %s39 = sphi 0, %s38
      %s55 = sphi 0, %s39
      %s61 = sphi 0, %s63
      %s64 = sphi 0, %s61
      %s65 = sphi 0, %s64
      %s81 = sphi 0, %s65
      %s87 = sphi 0, %s89
      %s90 = sphi 0, %s87
      %s91 = sphi 0, %s90
      %s107 = sphi 0, %s91
      %s115 = sphi 0, %s117
      %s118 = sphi 0, %s115
      %s119 = sphi 0, %s118
      %s135 = sphi 0, %s119
    $region4: #{tpu_custom_call.1} parent=1 // loop_header_branch
      %16 = sbr.rel (%p14) target = $region8
    $region5: #{tpu_custom_call.1} parent=1 // loop_body
      %s18 = ssub.s32 %s13, 1
      %s19 = ssub.s32 %s13, 2
      %s26 = sadd.s32 1, %s21
      %p27 = scmp.ge.s32.totalorder %s26, 2
      %s28 = scalar_select %p27, 0, %s26
      %s29 = sadd.s32 1, %s20
      %s30 = scalar_select %p27, %s29, %s20
      %p31 = scmp.ge.s32.totalorder %s30, 1
      %s32 = scalar_select %p31, 0, %s30
      %s33 = ssub.s32 %s20, %s32
      %p34 = scmp.eq.s32.totalorder %s33, 0
      %s36 = sadd.s32 %s35, 1
      %s37 = scalar_select %p34, %s35, %s36
      %p40 = pneg %p34
      %p41 = scmp.eq.s32.totalorder %s13, 1
      %p42 = por %p40, %p41
      %p43 = scmp.ne.s32.totalorder %s35, %s38
      %p44 = scmp.eq.s32.totalorder %s13, 0
      %p45 = por %p43, %p44
      %p46 = scmp.ne.s32.totalorder %s35, %s38
      %p47 = scmp.eq.s32.totalorder %s18, 1
      %p48 = por %p46, %p47
      %p49 = scmp.ne.s32.totalorder %s38, %s39
      %p50 = scmp.eq.s32.totalorder %s18, 0
      %p51 = por %p49, %p50
      %p52 = scmp.ne.s32.totalorder %s38, %s39
      %p53 = scmp.eq.s32.totalorder %s19, 1
      %p54 = por %p52, %p53
      %p56 = scmp.ne.s32.totalorder %s39, %s55
      %p57 = scmp.eq.s32.totalorder %s19, 0
      %p58 = por %p56, %p57
      %s59 = ssub.s32 %s21, %s28
      %p60 = scmp.eq.s32.totalorder %s59, 0
      %s62 = sadd.s32 %s61, 1
      %s63 = scalar_select %p60, %s61, %s62
      %p66 = pneg %p60
      %p67 = scmp.eq.s32.totalorder %s13, 1
      %p68 = por %p66, %p67
      %p69 = scmp.ne.s32.totalorder %s61, %s64
      %p70 = scmp.eq.s32.totalorder %s13, 0
      %p71 = por %p69, %p70
      %p72 = scmp.ne.s32.totalorder %s61, %s64
      %p73 = scmp.eq.s32.totalorder %s18, 1
      %p74 = por %p72, %p73
      %p75 = scmp.ne.s32.totalorder %s64, %s65
      %p76 = scmp.eq.s32.totalorder %s18, 0
      %p77 = por %p75, %p76
      %p78 = scmp.ne.s32.totalorder %s64, %s65
      %p79 = scmp.eq.s32.totalorder %s19, 1
      %p80 = por %p78, %p79
      %p82 = scmp.ne.s32.totalorder %s65, %s81
      %p83 = scmp.eq.s32.totalorder %s19, 0
      %p84 = por %p82, %p83
      %s85 = ssub.s32 %s21, %s28
      %p86 = scmp.eq.s32.totalorder %s85, 0
      %s88 = sadd.s32 %s87, 1
      %s89 = scalar_select %p86, %s87, %s88
      %p92 = pneg %p86
      %p93 = scmp.eq.s32.totalorder %s13, 1
      %p94 = por %p92, %p93
      %p95 = scmp.ne.s32.totalorder %s87, %s90
      %p96 = scmp.eq.s32.totalorder %s13, 0
      %p97 = por %p95, %p96
      %p98 = scmp.ne.s32.totalorder %s87, %s90
      %p99 = scmp.eq.s32.totalorder %s18, 1
      %p100 = por %p98, %p99
      %p101 = scmp.ne.s32.totalorder %s90, %s91
      %p102 = scmp.eq.s32.totalorder %s18, 0
      %p103 = por %p101, %p102
      %p104 = scmp.ne.s32.totalorder %s90, %s91
      %p105 = scmp.eq.s32.totalorder %s19, 1
      %p106 = por %p104, %p105
      %p108 = scmp.ne.s32.totalorder %s91, %s107
      %p109 = scmp.eq.s32.totalorder %s19, 0
      %p110 = por %p108, %p109
      %s111 = ssub.s32 %s21, %s28
      %s112 = ssub.s32 %s20, %s32
      %s113 = sor.u32 %s111, %s112
      %p114 = scmp.eq.s32.totalorder %s113, 0
      %s116 = sadd.s32 %s115, 1
      %s117 = scalar_select %p114, %s115, %s116
      %p120 = pneg %p114
      %p121 = scmp.eq.s32.totalorder %s13, 1
      %p122 = por %p120, %p121
      %p123 = scmp.ne.s32.totalorder %s115, %s118
      %p124 = scmp.eq.s32.totalorder %s13, 0
      %p125 = por %p123, %p124
      %p126 = scmp.ne.s32.totalorder %s115, %s118
      %p127 = scmp.eq.s32.totalorder %s18, 1
      %p128 = por %p126, %p127
      %p129 = scmp.ne.s32.totalorder %s118, %s119
      %p130 = scmp.eq.s32.totalorder %s18, 0
      %p131 = por %p129, %p130
      %p132 = scmp.ne.s32.totalorder %s118, %s119
      %p133 = scmp.eq.s32.totalorder %s19, 1
      %p134 = por %p132, %p133
      %p136 = scmp.ne.s32.totalorder %s119, %s135
      %p137 = scmp.eq.s32.totalorder %s19, 0
      %p138 = por %p136, %p137
      %p139 = scmp.le.s32.totalorder 1, %s13
      %p140 = scmp.lt.s32.totalorder %s13, 3
      %p141 = pnand %p139, %p140
      %p142 = pneg %p141
      // Predicated region
      $region9: #{tpu_custom_call.1} parent=5 // pred_check
        _
      $region10: #{tpu_custom_call.1} parent=5 // pred_check_branch
        %144 = sbr.rel (%p141) target = $region12
      $region11: #{tpu_custom_call.1} parent=5 // pred_region
        %s145 = ssub.s32 %s13, 1
        // Predicated region
        $region13: #{tpu_custom_call.1} parent=11 // pred_check
          %p146 = pneg %p51
        $region14: #{tpu_custom_call.1} parent=11 // pred_check_branch
          %148 = sbr.rel (%p146) target = $region16
        $region15: #{tpu_custom_call.1} parent=11 // pred_region
          %s149 = smul.u32 8, %s22
          %s151 = ssub.s32 1024, 1024
          %152 = vsyncadd [#allocation3], %s151
          %s153 = smul.addr %s149, 2
          %s154 = smul.addr %s153, 64
          %s155 = scalar_lea.hbm %s0, %s154
          %s156 = sshll.u32 [#allocation2], 4
          %s157 = int_to_ptr.vmem [resolvable:$true] %s156
          %162 = dma.hbm_to_vmem [thread:$0]  %s155, 1024, %s157, [#allocation3], 64, 64, 4
        $region16: #{tpu_custom_call.1} parent=11 // pred_fallthru
          _
      $region12: #{tpu_custom_call.1} parent=5 // pred_fallthru
        _
      %p163 = scmp.lt.s32.totalorder %s13, 2
      // Predicated region
      $region17: #{tpu_custom_call.1} parent=5 // pred_check
        %p164 = pneg %p163
      $region18: #{tpu_custom_call.1} parent=5 // pred_check_branch
        %166 = sbr.rel (%p164) target = $region20
      $region19: #{tpu_custom_call.1} parent=5 // pred_region
        // Predicated region
        $region21: #{tpu_custom_call.1} parent=19 // pred_check
          %p167 = pneg %p71
        $region22: #{tpu_custom_call.1} parent=19 // pred_check_branch
          %169 = sbr.rel (%p167) target = $region24
        $region23: #{tpu_custom_call.1} parent=19 // pred_region
          %p170 = scmp.lt.s32.totalorder %s21, 1
          %s171 = scalar_select %p170, %s21, 1
          %s172 = smul.addr %s171, 2
          %s173 = smul.addr %s172, 4
          %s174 = scalar_lea.vmem %s1, %s173
        $region24: #{tpu_custom_call.1} parent=19 // pred_fallthru
          _
        // Predicated region
        $region25: #{tpu_custom_call.1} parent=19 // pred_check
          %p175 = pneg %p97
        $region26: #{tpu_custom_call.1} parent=19 // pred_check_branch
          %177 = sbr.rel (%p175) target = $region28
        $region27: #{tpu_custom_call.1} parent=19 // pred_region
          %p178 = scmp.lt.s32.totalorder %s21, 1
          %s179 = scalar_select %p178, %s21, 1
          %s180 = smul.addr %s179, 4
          %s181 = smul.addr %s180, 4
          %s182 = scalar_lea.vmem %s2, %s181
        $region28: #{tpu_custom_call.1} parent=19 // pred_fallthru
          _
      $region20: #{tpu_custom_call.1} parent=5 // pred_fallthru
        _
      %p183 = scmp.le.s32.totalorder 1, %s13
      %p184 = scmp.lt.s32.totalorder %s13, 3
      %p185 = pnand %p183, %p184
      %p186 = pneg %p185
      // Predicated region
      $region29: #{tpu_custom_call.1} parent=5 // pred_check
        _
      $region30: #{tpu_custom_call.1} parent=5 // pred_check_branch
        %188 = sbr.rel (%p185) target = $region32
      $region31: #{tpu_custom_call.1} parent=5 // pred_region
        %s189 = ssub.s32 %s13, 1
        // Predicated region
        $region33: #{tpu_custom_call.1} parent=31 // pred_check
          %p190 = pneg %p51
        $region34: #{tpu_custom_call.1} parent=31 // pred_check_branch
          %192 = sbr.rel (%p190) target = $region36
        $region35: #{tpu_custom_call.1} parent=31 // pred_region
          %193 = dma.done [#allocation3], 1024
        $region36: #{tpu_custom_call.1} parent=31 // pred_fallthru
          _
        %p194 = pneg %p51
        %p195 = pneg %p48
        %p196 = scmp.lt.s32.totalorder %s23, 1
        %s197 = scalar_select %p196, %s23, 1
        %s198 = smul.addr %s197, 2
        %s199 = smul.addr %s198, 4
        %s200 = scalar_lea.vmem %s1, %s199
        %p201 = pneg %p77
        %p202 = pneg %p74
        %p203 = scmp.lt.s32.totalorder %s23, 1
        %s204 = scalar_select %p203, %s23, 1
        %s205 = smul.addr %s204, 4
        %s206 = smul.addr %s205, 4
        %s207 = scalar_lea.vmem %s2, %s206
        %p208 = pneg %p103
        %p209 = pneg %p100
        %p210 = pneg %p131
        %p211 = pneg %p128
        %s212 = sand.u32 %s118, 1
        %s213 = scalar_lea.sflag [#allocation4], %s212
        %s214 = sand.u32 %s118, 1
        %s215 = smul.addr %s214, 128
        %s216 = scalar_lea.vmem [#allocation5], %s215
        %s217 = smul.u32 8, %s22
        %p218 = scmp.lt.s32.totalorder %s23, 1
        %s219 = scalar_select %p218, %s23, 1
        %s220 = smul.addr %s219, 2
        %s221 = smul.addr %s220, 4
        %s222 = scalar_lea.vmem %s1, %s221
        %p223 = scmp.lt.s32.totalorder %s23, 1
        %s224 = scalar_select %p223, %s23, 1
        %s225 = smul.addr %s224, 4
        %s226 = smul.addr %s225, 4
        %s227 = scalar_lea.vmem %s2, %s226
        %s228 = smul.u32 2, %s23
        %s229 = smul.u32 8, %s22
        %v231 = vld [vmem:[%s222] sm:$0xf]
        %v232 = vld [vmem:[%s222 + $0x4] sm:$0xf]
        %v233 = vld [vmem:[%s227] sm:$0xf]
        %v234 = vld [vmem:[%s227 + $0x4] sm:$0xf]
        %v235 = vld [vmem:[%s227 + $0x8] sm:$0xf]
        %v236 = vld [vmem:[%s227 + $0xc] sm:$0xf]
        loop: start=0, step=1, limit=8
        $region37: #{tpu_custom_call.1} parent=31 // loop_pre_header
          _
        $region38: #{tpu_custom_call.1} parent=31 // loop_header
          %s238 = sphi 0, %s242
          %p239 = scmp.ge.s32.totalorder %s238, 8
        $region39: #{tpu_custom_call.1} parent=31 // loop_header_branch
          %241 = sbr.rel (%p239) target = $region43
        $region40: #{tpu_custom_call.1} parent=31 // loop_body
          %s243 = smul.u32 %s238, 2
          %s244 = smul.addr %s243, 4
          %s245 = scalar_lea.vmem [#allocation2], %s244
          %v246 = vld [vmem:[%s245] sm:$0xf]
          %v247 = vld [vmem:[%s245 + $0x4] sm:$0xf]
          %v250 = vunpack.c.l.b16 %v231
          %v251 = vunpack.c.l.b16 %v232
          %v252 = vpack.c.b16 %v251, %v250
          %v255 = vunpack.c.l.b16 %v246
          %v256 = vunpack.c.l.b16 %v247
          %v257 = vpack.c.b16 %v256, %v255
          %vm259 = vcmask 130048
          %v261 = vsel %vm259, %v252, 0
          %263 = vmatprep.subr.bf16.mxu0 0
          %264 = vmatpush1.bf16.msra.mxu0 %v257
          %265 = vmatprep.subr.bf16.mxu0 0
          %266 = vmatpush1.bf16.msra.mxu0 0
          %267 = vmatprep.subr.bf16.mxu0 0
          %268 = vmatpush1.bf16.msra.mxu0 0
          %269 = vmatprep.subr.bf16.mxu0 0
          %270 = vmatpush1.bf16.msra.mxu0 0
          %271 = vmatprep.subr.bf16.mxu0 0
          %272 = vmatpush1.bf16.msra.mxu0 0
          %273 = vmatprep.subr.bf16.mxu0 0
          %274 = vmatpush1.bf16.msra.mxu0 0
          %275 = vmatprep.subr.bf16.mxu0 0
          %276 = vmatpush1.bf16.msra.mxu0 0
          %277 = vmatprep.subr.bf16.mxu0 0
          %278 = vmatpush1.bf16.msra.mxu0 0
          %279 = vmatprep.subr.bf16.mxu0 0
          %280 = vmatpush1.bf16.msra.mxu0 0
          %281 = vmatprep.subr.bf16.mxu0 0
          %282 = vmatpush1.bf16.msra.mxu0 0
          %283 = vmatprep.subr.bf16.mxu0 0
          %284 = vmatpush1.bf16.msra.mxu0 0
          %285 = vmatprep.subr.bf16.mxu0 0
          %286 = vmatpush1.bf16.msra.mxu0 0
          %287 = vmatprep.subr.bf16.mxu0 0
          %288 = vmatpush1.bf16.msra.mxu0 0
          %289 = vmatprep.subr.bf16.mxu0 0
          %290 = vmatpush1.bf16.msra.mxu0 0
          %291 = vmatprep.subr.bf16.mxu0 0
          %292 = vmatpush1.bf16.msra.mxu0 0
          %293 = vmatprep.subr.bf16.mxu0 0
          %294 = vmatpush1.bf16.msra.mxu0 0
          %295 = vmatprep.mubr.bf16.mxu0 0
          %296 = vmatmul.mubr.bf16.gmra.mrb[0].mxu0 %v261
          %v297 = vpop.f32.mrb[0].mxu0
          %v298 = vadd.f32 0.0, %v297
          %v299 = vpop.f32.mrb[0].mxu0
          %v300 = vpop.f32.mrb[0].mxu0
          %v301 = vadd.f32 0.0, %v300
          %v302 = vpop.f32.mrb[0].mxu0
          %303 = vdwg.mxu0
          %v304 = vpack.c.bf16 %v301, %v298
          %v307 = vunpack.c.l.b16 %v233
          %v308 = vunpack.c.l.b16 %v234
          %v309 = vpack.c.b16 %v308, %v307
          %v312 = vsel %vm259, %v304, 0
          %314 = vmatprep.subr.bf16.mxu0 0
          %315 = vmatpush1.bf16.msra.mxu0 %v309
          %316 = vmatprep.subr.bf16.mxu0 0
          %317 = vmatpush1.bf16.msra.mxu0 0
          %318 = vmatprep.subr.bf16.mxu0 0
          %319 = vmatpush1.bf16.msra.mxu0 0
          %320 = vmatprep.subr.bf16.mxu0 0
          %321 = vmatpush1.bf16.msra.mxu0 0
          %322 = vmatprep.subr.bf16.mxu0 0
          %323 = vmatpush1.bf16.msra.mxu0 0
          %324 = vmatprep.subr.bf16.mxu0 0
          %325 = vmatpush1.bf16.msra.mxu0 0
          %326 = vmatprep.subr.bf16.mxu0 0
          %327 = vmatpush1.bf16.msra.mxu0 0
          %328 = vmatprep.subr.bf16.mxu0 0
          %329 = vmatpush1.bf16.msra.mxu0 0
          %330 = vmatprep.subr.bf16.mxu0 0
          %331 = vmatpush1.bf16.msra.mxu0 0
          %332 = vmatprep.subr.bf16.mxu0 0
          %333 = vmatpush1.bf16.msra.mxu0 0
          %334 = vmatprep.subr.bf16.mxu0 0
          %335 = vmatpush1.bf16.msra.mxu0 0
          %336 = vmatprep.subr.bf16.mxu0 0
          %337 = vmatpush1.bf16.msra.mxu0 0
          %338 = vmatprep.subr.bf16.mxu0 0
          %339 = vmatpush1.bf16.msra.mxu0 0
          %340 = vmatprep.subr.bf16.mxu0 0
          %341 = vmatpush1.bf16.msra.mxu0 0
          %342 = vmatprep.subr.bf16.mxu0 0
          %343 = vmatpush1.bf16.msra.mxu0 0
          %344 = vmatprep.subr.bf16.mxu0 0
          %345 = vmatpush1.bf16.msra.mxu0 0
          %346 = vmatprep.mubr.bf16.mxu0 0
          %347 = vmatmul.mubr.bf16.gmra.mrb[0].mxu0 %v312
          %v348 = vpop.f32.mrb[0].mxu0
          %v349 = vadd.f32 0.0, %v348
          %v350 = vpop.f32.mrb[0].mxu0
          %v351 = vpop.f32.mrb[0].mxu0
          %v352 = vpop.f32.mrb[0].mxu0
          %353 = vdwg.mxu0
          %v354 = vmax.f32 %v349, 0.0
          %v355 = vmin.f32 %v354, 1.0
          %s356 = smul.u32 %s238, 8
          %s357 = scalar_lea.vmem %s216, %s356 [#allocation5]
          %vm358 = vcmask 64512
          %359 = vst.msk [vmem:[%s357] sm:$0xff] %vm358, %v355
          %v361 = vrot.slane %v304, 4
          %v364 = vunpack.c.l.b16 %v235
          %v365 = vunpack.c.l.b16 %v236
          %v366 = vpack.c.b16 %v365, %v364
          %v369 = vsel %vm259, %v361, 0
          %371 = vmatprep.subr.bf16.mxu0 0
          %372 = vmatpush1.bf16.msra.mxu0 %v366
          %373 = vmatprep.subr.bf16.mxu0 0
          %374 = vmatpush1.bf16.msra.mxu0 0
          %375 = vmatprep.subr.bf16.mxu0 0
          %376 = vmatpush1.bf16.msra.mxu0 0
          %377 = vmatprep.subr.bf16.mxu0 0
          %378 = vmatpush1.bf16.msra.mxu0 0
          %379 = vmatprep.subr.bf16.mxu0 0
          %380 = vmatpush1.bf16.msra.mxu0 0
          %381 = vmatprep.subr.bf16.mxu0 0
          %382 = vmatpush1.bf16.msra.mxu0 0
          %383 = vmatprep.subr.bf16.mxu0 0
          %384 = vmatpush1.bf16.msra.mxu0 0
          %385 = vmatprep.subr.bf16.mxu0 0
          %386 = vmatpush1.bf16.msra.mxu0 0
          %387 = vmatprep.subr.bf16.mxu0 0
          %388 = vmatpush1.bf16.msra.mxu0 0
          %389 = vmatprep.subr.bf16.mxu0 0
          %390 = vmatpush1.bf16.msra.mxu0 0
          %391 = vmatprep.subr.bf16.mxu0 0
          %392 = vmatpush1.bf16.msra.mxu0 0
          %393 = vmatprep.subr.bf16.mxu0 0
          %394 = vmatpush1.bf16.msra.mxu0 0
          %395 = vmatprep.subr.bf16.mxu0 0
          %396 = vmatpush1.bf16.msra.mxu0 0
          %397 = vmatprep.subr.bf16.mxu0 0
          %398 = vmatpush1.bf16.msra.mxu0 0
          %399 = vmatprep.subr.bf16.mxu0 0
          %400 = vmatpush1.bf16.msra.mxu0 0
          %401 = vmatprep.subr.bf16.mxu0 0
          %402 = vmatpush1.bf16.msra.mxu0 0
          %403 = vmatprep.mubr.bf16.mxu0 0
          %404 = vmatmul.mubr.bf16.gmra.mrb[0].mxu0 %v369
          %v405 = vpop.f32.mrb[0].mxu0
          %v406 = vadd.f32 0.0, %v405
          %v407 = vpop.f32.mrb[0].mxu0
          %v408 = vpop.f32.mrb[0].mxu0
          %v409 = vpop.f32.mrb[0].mxu0
          %410 = vdwg.mxu0
          %v411 = vmax.f32 %v406, 0.0
          %v412 = vmin.f32 %v411, 1.0
          %s413 = sadd.s32 %s356, 64
          %s414 = scalar_lea.vmem %s216, %s413 [#allocation5]
          %415 = vst.msk [vmem:[%s414] sm:$0xff] %vm358, %v412
        $region41: #{tpu_custom_call.1} parent=31 // loop_footer
          %s242 = sadd.s32 1, %s238
        $region42: #{tpu_custom_call.1} parent=31 // loop_footer_branch
          %237 = sbr.rel target = $region38
        $region43: #{tpu_custom_call.1} parent=31 // loop_exit
          _
        %s416 = sand.u32 %s118, 1
        %s417 = scalar_lea.sflag [#allocation4], %s416
        %s418 = sand.u32 %s118, 1
        %s419 = smul.addr %s418, 128
        %s420 = scalar_lea.vmem [#allocation5], %s419
        // Predicated region
        $region44: #{tpu_custom_call.1} parent=31 // pred_check
          %p421 = pneg %p128
        $region45: #{tpu_custom_call.1} parent=31 // pred_check_branch
          %423 = sbr.rel (%p421) target = $region47
        $region46: #{tpu_custom_call.1} parent=31 // pred_region
          %s424 = smul.u32 2, %s23
          %s425 = smul.u32 8, %s22
          %s427 = ssub.s32 2048, 2048
          %428 = vsyncadd %s417, %s427
          %s429 = smul.addr %s424, 8
          %s430 = sadd.s32 %s425, %s429
          %s431 = smul.addr %s430, 128
          %s432 = scalar_lea.hbm %s3, %s431
          %s433 = sshll.u32 %s420, 4
          %s434 = int_to_ptr.vmem [resolvable:$true] %s433
          %439 = dma.vmem_to_hbm [thread:$0]  %s434, 2048, %s432, %s417, 128, 128, 8
        $region47: #{tpu_custom_call.1} parent=31 // pred_fallthru
          _
      $region32: #{tpu_custom_call.1} parent=5 // pred_fallthru
        _
      %p440 = scmp.le.s32.totalorder 2, %s13
      // Predicated region
      $region48: #{tpu_custom_call.1} parent=5 // pred_check
        %p441 = pneg %p440
      $region49: #{tpu_custom_call.1} parent=5 // pred_check_branch
        %443 = sbr.rel (%p441) target = $region51
      $region50: #{tpu_custom_call.1} parent=5 // pred_region
        %s444 = ssub.s32 %s13, 2
        // Predicated region
        $region52: #{tpu_custom_call.1} parent=50 // pred_check
          %p445 = pneg %p134
        $region53: #{tpu_custom_call.1} parent=50 // pred_check_branch
          %447 = sbr.rel (%p445) target = $region55
        $region54: #{tpu_custom_call.1} parent=50 // pred_region
          %s448 = sand.u32 %s119, 1
          %s449 = scalar_lea.sflag [#allocation4], %s448
          %s450 = sand.u32 %s119, 1
          %s451 = smul.addr %s450, 128
          %s452 = scalar_lea.vmem [#allocation5], %s451
          %453 = dma.done %s449, 2048
        $region55: #{tpu_custom_call.1} parent=50 // pred_fallthru
          _
      $region51: #{tpu_custom_call.1} parent=5 // pred_fallthru
        _
    $region6: #{tpu_custom_call.1} parent=1 // loop_footer
      %s17 = sadd.s32 1, %s13
    $region7: #{tpu_custom_call.1} parent=1 // loop_footer_branch
      %12 = sbr.rel target = $region3
    $region8: #{tpu_custom_call.1} parent=1 // loop_exit
      _
    %454 = vsyncpa [#allocation3], 1
    %s455 = scalar_lea.sflag [#allocation3], 1
    %456 = vsyncpa %s455, 1
    %457 = vsyncpa [#allocation4], 1
    %s458 = scalar_lea.sflag [#allocation4], 1
    %459 = vsyncpa %s458, 1

</llo_original>
